<compile_context>
chip_gen: v7x
topology: tpu7x:2x2x1
jax: 0.10.0
libtpu: 0.0.40
codegen_flags: <defaults>
</compile_context>

<pallas_src>
import functools

import jax
import jax.numpy as jnp
from jax.experimental import pallas as pl
from jax.experimental.pallas import tpu as pltpu


def _attention_kernel(q_ref, k_ref, v_ref, mask_ref, o_ref):
    # q_ref    : (Bt, K)
    # k_ref    : (Bt, S, K)
    # v_ref    : (Bt, S, V)
    # mask_ref : (Bt, S)
    # o_ref    : (Bt, V)
    q = q_ref[...]                                  # (Bt, K)
    k = k_ref[...]                                  # (Bt, S, K)
    v = v_ref[...]                                  # (Bt, S, V)
    m = mask_ref[...]                               # (Bt, S)

    # scores[b, s] = <q[b], k[b, s]>  -- broadcast-multiply + lane reduce.
    # Memory-bound kernel, so the VPU/XLU formulation is free and keeps every
    # softmax intermediate a dense (Bt, S) tile (no size-1 sublane dim).
    scores = jnp.sum(q[:, None, :] * k, axis=-1)    # (Bt, S), f32

    # torch zeroes keys at masked positions (score becomes exactly 0) and then
    # maps score == 0 -> -inf.  Masking the scores directly is equivalent and
    # skips the O(S*(K+V)) where-passes over keys/values.
    masked = (m != 0) | (scores == 0.0)             # (Bt, S) bool

    # Explicitly-masked softmax: no -inf/NaN propagation, no isnan clean-up,
    # no approximate reciprocal (that approximation caused the >1e-3 mismatch).
    neg_big = jnp.float32(jnp.finfo(jnp.float32).min)
    s_max = jnp.max(jnp.where(masked, neg_big, scores), axis=-1, keepdims=True)
    e = jnp.where(masked, 0.0, jnp.exp(scores - s_max))     # masked -> exactly 0
    denom = jnp.sum(e, axis=-1, keepdims=True)
    denom = jnp.where(denom == 0.0, 1.0, denom)              # fully-masked row -> w == 0
    w = e / denom                                            # exact divide

    # Masked positions carry weight exactly 0.0, so using raw `values` matches
    # the original value-zeroing for finite inputs.
    out = jnp.sum(w[:, :, None] * v, axis=1)                 # (Bt, V)
    o_ref[...] = out.astype(o_ref.dtype)


@functools.partial(jax.jit, static_argnames=("block_b", "vmem_limit_bytes"))
def attention(query, keys, values, mask, *, block_b=None,
              vmem_limit_bytes=48 * 1024 * 1024):
    B, K = query.shape
    _, S, _ = keys.shape
    V = values.shape[-1]

    if block_b is None:
        # Memory-bound kernel: target ~2 MiB per-step input tiles (measured sweet
        # spot for HBM roofline) while keeping >= 2 grid steps (>= 4 for large B)
        # so double-buffering overlaps DMA with compute and the "parallel" batch
        # axis can be split across v7x's two TensorCores.  Double-buffered tiles
        # of this size stay well inside v7x's 64 MiB VMEM; v5e/v6e have headroom.
        itemsize = jnp.dtype(keys.dtype).itemsize
        per_batch = ((S * (K + V) + K + V) * itemsize
                     + S * jnp.dtype(mask.dtype).itemsize)
        target_tile_bytes = 2 * 1024 * 1024
        bb = max(1, int(target_tile_bytes // max(per_batch, 1)))
        bb = min(bb, B)
        if B >= 2:
            bb = min(bb, max(1, B // 2))     # at least 2 grid steps
        if B >= 32:
            bb = min(bb, max(8, B // 4))     # prefer >= 4 steps when batch allows
        if bb >= 8:
            bb = (bb // 8) * 8               # keep the sublane dim 8-aligned
        block_b = bb
    block_b = max(1, min(block_b, B))

    # NOTE: when B % block_b != 0 the padded tail block computes on out-of-range
    # rows; rows are independent and the padded writes are dropped, so this is
    # harmless.  TODO(synk): for very long S where a (Bt, S, K+V) tile no longer
    # fits VMEM, add a trailing "arbitrary" S grid axis with an online softmax.
    grid = (pl.cdiv(B, block_b),)

    return pl.pallas_call(
        _attention_kernel,
        out_shape=jax.ShapeDtypeStruct((B, V), query.dtype),
        grid=grid,
        in_specs=[
            pl.BlockSpec((block_b, K), lambda b: (b, 0)),
            pl.BlockSpec((block_b, S, K), lambda b: (b, 0, 0)),
            pl.BlockSpec((block_b, S, V), lambda b: (b, 0, 0)),
            pl.BlockSpec((block_b, S), lambda b: (b, 0)),
        ],
        out_specs=pl.BlockSpec((block_b, V), lambda b: (b, 0)),
        compiler_params=pltpu.CompilerParams(
            dimension_semantics=("parallel",),
            vmem_limit_bytes=vmem_limit_bytes),
    )(query, keys, values, mask)


def attention_reference(query, keys, values, mask):
    """Plain JAX reference mirroring the PyTorch forward, for verification."""
    masked = (mask != 0)[..., None]                       # (B, S, 1)
    k = jnp.where(masked, 0.0, keys)
    v = jnp.where(masked, 0.0, values)
    scores = jnp.sum(query[:, None, :] * k, axis=-1)      # (B, S)
    scores = jnp.where(scores == 0.0, -jnp.inf, scores)
    w = jax.nn.softmax(scores, axis=-1)
    w = jnp.where(jnp.isnan(w), 0.0, w)                   # fully-masked rows -> 0
    return jnp.sum(w[:, :, None] * v, axis=1)             # (B, V)


if __name__ == "__main__":
    # Small deterministic example with a lane-dense (128-wide) value dim.
    B, S, K, V = 16, 16, 128, 128
    key = jax.random.PRNGKey(0)
    kq, kk, kv = jax.random.split(key, 3)

    query = jax.random.normal(kq, (B, K), dtype=jnp.float32)
    keys = jax.random.normal(kk, (B, S, K), dtype=jnp.float32)
    values = jax.random.normal(kv, (B, S, V), dtype=jnp.float32)
    # mask: 1.0 marks padded positions; row 0 is fully masked (exercises the
    # NaN->0 path of the original module).
    lengths = jnp.arange(B, dtype=jnp.int32) % (S + 1)
    mask = (jnp.arange(S)[None, :] >= lengths[:, None]).astype(jnp.float32)

    out = attention(query, keys, values, mask, block_b=8)   # explicit 2-step grid
    out_auto = attention(query, keys, values, mask)         # auto-sized tile
    jax.block_until_ready((out, out_auto))

    ref = attention_reference(query, keys, values, mask)
    assert out.shape == (B, V)
    assert jnp.allclose(out, ref, atol=1e-3, rtol=1e-3), "mismatch vs reference"
    assert jnp.allclose(out_auto, ref, atol=1e-3, rtol=1e-3), "mismatch (auto tile)"

    print("KERNEL_OK")
</pallas_src>

<mosaic_0001>
module attributes {stable_mosaic.version = 11 : i64} {
  func.func @_attention_kernel(%arg0: i32, %arg1: memref<8x128xf32, #tpu.memory_space<vmem>>, %arg2: memref<8x16x128xf32, #tpu.memory_space<vmem>>, %arg3: memref<8x16x128xf32, #tpu.memory_space<vmem>>, %arg4: memref<8x16xf32, #tpu.memory_space<vmem>>, %arg5: memref<8x128xf32, #tpu.memory_space<vmem>>) attributes {dimension_semantics = [#tpu.dimension_semantics<parallel>], iteration_bounds = array<i64: 2>, scalar_prefetch = 0 : i64, scratch_operands = 0 : i64, tpu.core_type = #tpu.core_type<tc>, window_params = [{transform_indices = @transform_0, window_bounds = array<i64: 8, 128>}, {transform_indices = @transform_1, window_bounds = array<i64: 8, 16, 128>}, {transform_indices = @transform_2, window_bounds = array<i64: 8, 16, 128>}, {transform_indices = @transform_3, window_bounds = array<i64: 8, 16>}, {transform_indices = @transform_4, window_bounds = array<i64: 8, 128>}]} {
    %c0 = arith.constant 0 : index
    %c0_0 = arith.constant 0 : index
    %0 = vector.load %arg1[%c0, %c0_0] : memref<8x128xf32, #tpu.memory_space<vmem>>, vector<8x128xf32>
    %c0_1 = arith.constant 0 : index
    %c0_2 = arith.constant 0 : index
    %c0_3 = arith.constant 0 : index
    %1 = vector.load %arg2[%c0_1, %c0_2, %c0_3] : memref<8x16x128xf32, #tpu.memory_space<vmem>>, vector<8x16x128xf32>
    %c0_4 = arith.constant 0 : index
    %c0_5 = arith.constant 0 : index
    %c0_6 = arith.constant 0 : index
    %2 = vector.load %arg3[%c0_4, %c0_5, %c0_6] : memref<8x16x128xf32, #tpu.memory_space<vmem>>, vector<8x16x128xf32>
    %c0_7 = arith.constant 0 : index
    %c0_8 = arith.constant 0 : index
    %3 = vector.load %arg4[%c0_7, %c0_8] : memref<8x16xf32, #tpu.memory_space<vmem>>, vector<8x16xf32>
    %4 = vector.shape_cast %0 : vector<8x128xf32> to vector<8x1x128xf32>
    %5 = vector.broadcast %4 : vector<8x1x128xf32> to vector<8x16x128xf32>
    %6 = arith.mulf %5, %1 : vector<8x16x128xf32>
    %cst = arith.constant dense<0.000000e+00> : vector<8x16xf32>
    %7 = vector.multi_reduction <add>, %6, %cst [2] : vector<8x16x128xf32> to vector<8x16xf32>
    %cst_9 = arith.constant 0.000000e+00 : f32
    %8 = vector.broadcast %cst_9 : f32 to vector<8x16xf32>
    %9 = arith.cmpf one, %3, %8 : vector<8x16xf32>
    %cst_10 = arith.constant 0.000000e+00 : f32
    %10 = vector.broadcast %cst_10 : f32 to vector<8x16xf32>
    %11 = arith.cmpf oeq, %7, %10 : vector<8x16xf32>
    %12 = arith.ori %9, %11 : vector<8x16xi1>
    %cst_11 = arith.constant -3.40282347E+38 : f32
    %13 = vector.broadcast %cst_11 : f32 to vector<8x16xf32>
    %14 = arith.select %12, %13, %7 : vector<8x16xi1>, vector<8x16xf32>
    %cst_12 = arith.constant dense<0xFF800000> : vector<8xf32>
    %15 = vector.multi_reduction <maximumf>, %14, %cst_12 [1] : vector<8x16xf32> to vector<8xf32>
    %16 = vector.shape_cast %15 : vector<8xf32> to vector<8x1xf32>
    %17 = vector.broadcast %16 : vector<8x1xf32> to vector<8x16xf32>
    %18 = arith.subf %7, %17 : vector<8x16xf32>
    %19 = math.exp %18 : vector<8x16xf32>
    %cst_13 = arith.constant 0.000000e+00 : f32
    %20 = vector.broadcast %cst_13 : f32 to vector<8x16xf32>
    %21 = arith.select %12, %20, %19 : vector<8x16xi1>, vector<8x16xf32>
    %cst_14 = arith.constant dense<0.000000e+00> : vector<8xf32>
    %22 = vector.multi_reduction <add>, %21, %cst_14 [1] : vector<8x16xf32> to vector<8xf32>
    %23 = vector.shape_cast %22 : vector<8xf32> to vector<8x1xf32>
    %cst_15 = arith.constant 0.000000e+00 : f32
    %24 = vector.broadcast %cst_15 : f32 to vector<8x1xf32>
    %25 = arith.cmpf oeq, %23, %24 : vector<8x1xf32>
    %cst_16 = arith.constant 1.000000e+00 : f32
    %26 = vector.broadcast %cst_16 : f32 to vector<8x1xf32>
    %27 = arith.select %25, %26, %23 : vector<8x1xi1>, vector<8x1xf32>
    %28 = vector.broadcast %27 : vector<8x1xf32> to vector<8x16xf32>
    %29 = arith.divf %21, %28 : vector<8x16xf32>
    %30 = vector.shape_cast %29 : vector<8x16xf32> to vector<8x16x1xf32>
    %31 = vector.broadcast %30 : vector<8x16x1xf32> to vector<8x16x128xf32>
    %32 = arith.mulf %31, %2 : vector<8x16x128xf32>
    %cst_17 = arith.constant dense<0.000000e+00> : vector<8x128xf32>
    %33 = vector.multi_reduction <add>, %32, %cst_17 [1] : vector<8x16x128xf32> to vector<8x128xf32>
    %c0_18 = arith.constant 0 : index
    %c0_19 = arith.constant 0 : index
    %34 = vector.load %arg5[%c0_18, %c0_19] : memref<8x128xf32, #tpu.memory_space<vmem>>, vector<8x128xf32>
    tpu.vector_store %arg5[%c0_18, %c0_19], %33 {strides = array<i32>} : memref<8x128xf32, #tpu.memory_space<vmem>>, vector<8x128xf32>,
    return
  }
  func.func @transform_0(%arg0: i32) -> (i32, i32) {
    %c0_i32 = arith.constant 0 : i32
    %c0_i32_0 = arith.constant 0 : i32
    return %arg0, %c0_i32 : i32, i32
  }
  func.func @transform_1(%arg0: i32) -> (i32, i32, i32) {
    %c0_i32 = arith.constant 0 : i32
    %c0_i32_0 = arith.constant 0 : i32
    %c0_i32_1 = arith.constant 0 : i32
    return %arg0, %c0_i32, %c0_i32_0 : i32, i32, i32
  }
  func.func @transform_2(%arg0: i32) -> (i32, i32, i32) {
    %c0_i32 = arith.constant 0 : i32
    %c0_i32_0 = arith.constant 0 : i32
    %c0_i32_1 = arith.constant 0 : i32
    return %arg0, %c0_i32, %c0_i32_0 : i32, i32, i32
  }
  func.func @transform_3(%arg0: i32) -> (i32, i32) {
    %c0_i32 = arith.constant 0 : i32
    %c0_i32_0 = arith.constant 0 : i32
    return %arg0, %c0_i32 : i32, i32
  }
  func.func @transform_4(%arg0: i32) -> (i32, i32) {
    %c0_i32 = arith.constant 0 : i32
    %c0_i32_0 = arith.constant 0 : i32
    return %arg0, %c0_i32 : i32, i32
  }
}

</mosaic_0001>

<llo_original>
// kernel: attention.1
$region0: #{attention.1}
  #allocation0 [shape = 'u32[]', space=smem, size = 0x4, offset = 0x4, fixed_abs, tag = 'smem constant byte address 0x4 - core index']
  #allocation1 [shape = 'u32[144,128]{1,0:T(1,128)}', space=vmem, size = 0x12000, scoped, tag = 'internal scratch']
  %s0 = inlined_call_operand.hbm [shape: f32[16,128], index: 0, kind: input, shape index: {}]
  %s1 = inlined_call_operand.hbm [shape: f32[16,16,128], index: 1, kind: input, shape index: {}]
  %s2 = inlined_call_operand.hbm [shape: f32[16,16,128], index: 2, kind: input, shape index: {}]
  %s3 = inlined_call_operand.hbm [shape: f32[16,16], index: 3, kind: input, shape index: {}]
  %s4 = inlined_call_operand.hbm [shape: f32[16,128], index: 4, kind: output, shape index: {}]
  %s5 = sld [smem:[#allocation0]]
  $region65: #{attention.1} parent=0
    _
  %s7 = ssub.s32 1, %s5
  %s8 = scalar_select 0, %s7, %s5
  $region1: #{attention.1} parent=0
    #allocation2 [shape = 'u8[8192]{0}', space=vmem, size = 0x2000, scoped, tag = 'input window, operand 0']
    #allocation3 [shape = 's32[2]{0}', space=sflag, size = 0x8, scoped, tag = 'scoped memory for attention.1']
    #allocation4 [shape = 's32[2]{0}', space=sflag, size = 0x8, scoped, tag = 'scoped memory for attention.1']
    #allocation5 [shape = 'u8[131072]{0}', space=vmem, size = 0x20000, scoped, tag = 'input window, operand 1']
    #allocation6 [shape = 's32[2]{0}', space=sflag, size = 0x8, scoped, tag = 'scoped memory for attention.1']
    #allocation7 [shape = 'u8[131072]{0}', space=vmem, size = 0x20000, scoped, tag = 'input window, operand 2']
    #allocation8 [shape = 'u8[8192]{0}', space=vmem, size = 0x2000, scoped, tag = 'input window, operand 3']
    #allocation9 [shape = 's32[2]{0}', space=sflag, size = 0x8, scoped, tag = 'scoped memory for attention.1']
    #allocation10 [shape = 'u8[8192]{0}', space=vmem, size = 0x2000, scoped, tag = 'output window, operand 0']
    %9 = vsyncpa [#allocation3], 0
    %s10 = scalar_lea.sflag [#allocation3], 1
    %11 = vsyncpa %s10, 0
    %12 = vsyncpa [#allocation6], 0
    %s13 = scalar_lea.sflag [#allocation6], 1
    %14 = vsyncpa %s13, 0
    %15 = vsyncpa [#allocation9], 0
    %s16 = scalar_lea.sflag [#allocation9], 1
    %17 = vsyncpa %s16, 0
    %18 = vsyncpa [#allocation4], 0
    %s19 = scalar_lea.sflag [#allocation4], 1
    %20 = vsyncpa %s19, 0
    loop: start=0, step=1, limit=4
    $region2: #{attention.1} parent=1 // loop_pre_header
      _
    $region3: #{attention.1} parent=1 // loop_header
      %s22 = sphi 0, %s26
      %p23 = scmp.ge.s32.totalorder %s22, 4
      %s32 = sphi 0, %s34
      %s35 = sphi 0, %s32
      %s36 = sphi 0, %s35
      %s52 = sphi 0, %s36
      %s58 = sphi 0, %s60
      %s61 = sphi 0, %s58
      %s62 = sphi 0, %s61
      %s78 = sphi 0, %s62
      %s84 = sphi 0, %s86
      %s87 = sphi 0, %s84
      %s88 = sphi 0, %s87
      %s104 = sphi 0, %s88
      %s110 = sphi 0, %s112
      %s113 = sphi 0, %s110
      %s114 = sphi 0, %s113
      %s130 = sphi 0, %s114
      %s136 = sphi 0, %s138
      %s139 = sphi 0, %s136
      %s140 = sphi 0, %s139
      %s156 = sphi 0, %s140
    $region4: #{attention.1} parent=1 // loop_header_branch
      %25 = sbr.rel (%p23) target = $region8
    $region5: #{attention.1} parent=1 // loop_body
      %s27 = ssub.s32 %s22, 1
      %s28 = ssub.s32 %s22, 2
      %s29 = sadd.s32 %s22, 1
      %s30 = ssub.s32 %s22, %s29
      %p31 = scmp.eq.s32.totalorder %s30, 0
      %s33 = sadd.s32 %s32, 1
      %s34 = scalar_select %p31, %s32, %s33
      %p37 = pneg %p31
      %p38 = scmp.eq.s32.totalorder %s22, 1
      %p39 = por %p37, %p38
      %p40 = scmp.ne.s32.totalorder %s32, %s35
      %p41 = scmp.eq.s32.totalorder %s22, 0
      %p42 = por %p40, %p41
      %p43 = scmp.ne.s32.totalorder %s32, %s35
      %p44 = scmp.eq.s32.totalorder %s27, 1
      %p45 = por %p43, %p44
      %p46 = scmp.ne.s32.totalorder %s35, %s36
      %p47 = scmp.eq.s32.totalorder %s27, 0
      %p48 = por %p46, %p47
      %p49 = scmp.ne.s32.totalorder %s35, %s36
      %p50 = scmp.eq.s32.totalorder %s28, 1
      %p51 = por %p49, %p50
      %p53 = scmp.ne.s32.totalorder %s36, %s52
      %p54 = scmp.eq.s32.totalorder %s28, 0
      %p55 = por %p53, %p54
      %s56 = ssub.s32 %s22, %s29
      %p57 = scmp.eq.s32.totalorder %s56, 0
      %s59 = sadd.s32 %s58, 1
      %s60 = scalar_select %p57, %s58, %s59
      %p63 = pneg %p57
      %p64 = scmp.eq.s32.totalorder %s22, 1
      %p65 = por %p63, %p64
      %p66 = scmp.ne.s32.totalorder %s58, %s61
      %p67 = scmp.eq.s32.totalorder %s22, 0
      %p68 = por %p66, %p67
      %p69 = scmp.ne.s32.totalorder %s58, %s61
      %p70 = scmp.eq.s32.totalorder %s27, 1
      %p71 = por %p69, %p70
      %p72 = scmp.ne.s32.totalorder %s61, %s62
      %p73 = scmp.eq.s32.totalorder %s27, 0
      %p74 = por %p72, %p73
      %p75 = scmp.ne.s32.totalorder %s61, %s62
      %p76 = scmp.eq.s32.totalorder %s28, 1
      %p77 = por %p75, %p76
      %p79 = scmp.ne.s32.totalorder %s62, %s78
      %p80 = scmp.eq.s32.totalorder %s28, 0
      %p81 = por %p79, %p80
      %s82 = ssub.s32 %s22, %s29
      %p83 = scmp.eq.s32.totalorder %s82, 0
      %s85 = sadd.s32 %s84, 1
      %s86 = scalar_select %p83, %s84, %s85
      %p89 = pneg %p83
      %p90 = scmp.eq.s32.totalorder %s22, 1
      %p91 = por %p89, %p90
      %p92 = scmp.ne.s32.totalorder %s84, %s87
      %p93 = scmp.eq.s32.totalorder %s22, 0
      %p94 = por %p92, %p93
      %p95 = scmp.ne.s32.totalorder %s84, %s87
      %p96 = scmp.eq.s32.totalorder %s27, 1
      %p97 = por %p95, %p96
      %p98 = scmp.ne.s32.totalorder %s87, %s88
      %p99 = scmp.eq.s32.totalorder %s27, 0
      %p100 = por %p98, %p99
      %p101 = scmp.ne.s32.totalorder %s87, %s88
      %p102 = scmp.eq.s32.totalorder %s28, 1
      %p103 = por %p101, %p102
      %p105 = scmp.ne.s32.totalorder %s88, %s104
      %p106 = scmp.eq.s32.totalorder %s28, 0
      %p107 = por %p105, %p106
      %s108 = ssub.s32 %s22, %s29
      %p109 = scmp.eq.s32.totalorder %s108, 0
      %s111 = sadd.s32 %s110, 1
      %s112 = scalar_select %p109, %s110, %s111
      %p115 = pneg %p109
      %p116 = scmp.eq.s32.totalorder %s22, 1
      %p117 = por %p115, %p116
      %p118 = scmp.ne.s32.totalorder %s110, %s113
      %p119 = scmp.eq.s32.totalorder %s22, 0
      %p120 = por %p118, %p119
      %p121 = scmp.ne.s32.totalorder %s110, %s113
      %p122 = scmp.eq.s32.totalorder %s27, 1
      %p123 = por %p121, %p122
      %p124 = scmp.ne.s32.totalorder %s113, %s114
      %p125 = scmp.eq.s32.totalorder %s27, 0
      %p126 = por %p124, %p125
      %p127 = scmp.ne.s32.totalorder %s113, %s114
      %p128 = scmp.eq.s32.totalorder %s28, 1
      %p129 = por %p127, %p128
      %p131 = scmp.ne.s32.totalorder %s114, %s130
      %p132 = scmp.eq.s32.totalorder %s28, 0
      %p133 = por %p131, %p132
      %s134 = ssub.s32 %s22, %s29
      %p135 = scmp.eq.s32.totalorder %s134, 0
      %s137 = sadd.s32 %s136, 1
      %s138 = scalar_select %p135, %s136, %s137
      %p141 = pneg %p135
      %p142 = scmp.eq.s32.totalorder %s22, 1
      %p143 = por %p141, %p142
      %p144 = scmp.ne.s32.totalorder %s136, %s139
      %p145 = scmp.eq.s32.totalorder %s22, 0
      %p146 = por %p144, %p145
      %p147 = scmp.ne.s32.totalorder %s136, %s139
      %p148 = scmp.eq.s32.totalorder %s27, 1
      %p149 = por %p147, %p148
      %p150 = scmp.ne.s32.totalorder %s139, %s140
      %p151 = scmp.eq.s32.totalorder %s27, 0
      %p152 = por %p150, %p151
      %p153 = scmp.ne.s32.totalorder %s139, %s140
      %p154 = scmp.eq.s32.totalorder %s28, 1
      %p155 = por %p153, %p154
      %p157 = scmp.ne.s32.totalorder %s140, %s156
      %p158 = scmp.eq.s32.totalorder %s28, 0
      %p159 = por %p157, %p158
      %p160 = scmp.le.s32.totalorder 1, %s22
      %p161 = scmp.lt.s32.totalorder %s22, 3
      %p162 = pnand %p160, %p161
      %p163 = pneg %p162
      // Predicated region
      $region9: #{attention.1} parent=5 // pred_check
        _
      $region10: #{attention.1} parent=5 // pred_check_branch
        %165 = sbr.rel (%p162) target = $region12
      $region11: #{attention.1} parent=5 // pred_region
        %s166 = ssub.s32 %s22, 1
      $region12: #{attention.1} parent=5 // pred_fallthru
        _
      %p167 = scmp.lt.s32.totalorder %s22, 2
      // Predicated region
      $region13: #{attention.1} parent=5 // pred_check
        %p168 = pneg %p167
      $region14: #{attention.1} parent=5 // pred_check_branch
        %170 = sbr.rel (%p168) target = $region16
      $region15: #{attention.1} parent=5 // pred_region
        // Predicated region
        $region17: #{attention.1} parent=15 // pred_check
          %p171 = pneg %p42
        $region18: #{attention.1} parent=15 // pred_check_branch
          %173 = sbr.rel (%p171) target = $region20
        $region19: #{attention.1} parent=15 // pred_region
          %s174 = sand.u32 %s32, 1
          %s175 = scalar_lea.sflag [#allocation3], %s174
          %s176 = sand.u32 %s32, 1
          %s177 = smul.addr %s176, 8
          %s178 = scalar_lea.vmem [#allocation2], %s177
          %s180 = ssub.s32 128, 128
          %181 = vsyncadd %s175, %s180
          %s182 = smul.addr %s22, 128
          %s183 = scalar_lea.hbm %s0, %s182
          %s185 = sshll.u32 %s178, 4
          %s186 = int_to_ptr.vmem [resolvable:$true] %s185
          %188 = dma.hbm_to_vmem [thread:$0]  %s183, 128, %s186, %s175
        $region20: #{attention.1} parent=15 // pred_fallthru
          _
        // Predicated region
        $region21: #{attention.1} parent=15 // pred_check
          %p189 = pneg %p68
        $region22: #{attention.1} parent=15 // pred_check_branch
          %191 = sbr.rel (%p189) target = $region24
        $region23: #{attention.1} parent=15 // pred_region
          %s192 = sand.u32 %s22, 1
          %s193 = scalar_lea.sflag [#allocation6], %s192
          %s194 = sand.u32 %s58, 1
          %s195 = smul.addr %s194, 128
          %s196 = scalar_lea.vmem [#allocation5], %s195
          %s197 = smul.u32 8, %s22
          %s199 = ssub.s32 2048, 2048
          %200 = vsyncadd %s193, %s199
          %s201 = smul.addr %s197, 2
          %s202 = smul.addr %s201, 128
          %s203 = scalar_lea.hbm %s1, %s202
          %s204 = sshll.u32 %s196, 4
          %s205 = int_to_ptr.vmem [resolvable:$true] %s204
          %210 = dma.hbm_to_vmem [thread:$0]  %s203, 2048, %s205, %s193, 128, 128, 8
        $region24: #{attention.1} parent=15 // pred_fallthru
          _
        // Predicated region
        $region25: #{attention.1} parent=15 // pred_check
          %p211 = pneg %p94
        $region26: #{attention.1} parent=15 // pred_check_branch
          %213 = sbr.rel (%p211) target = $region28
        $region27: #{attention.1} parent=15 // pred_region
          %s214 = sand.u32 %s22, 1
          %s215 = scalar_lea.sflag [#allocation6], %s214
          %s216 = sand.u32 %s84, 1
          %s217 = smul.addr %s216, 128
          %s218 = scalar_lea.vmem [#allocation7], %s217
          %s219 = smul.u32 8, %s22
          %s221 = ssub.s32 2048, 2048
          %222 = vsyncadd %s215, %s221
          %s223 = smul.addr %s219, 2
          %s224 = smul.addr %s223, 128
          %s225 = scalar_lea.hbm %s2, %s224
          %s226 = sshll.u32 %s218, 4
          %s227 = int_to_ptr.vmem [resolvable:$true] %s226
          %232 = dma.hbm_to_vmem [thread:$0]  %s225, 2048, %s227, %s215, 128, 128, 8
        $region28: #{attention.1} parent=15 // pred_fallthru
          _
        // Predicated region
        $region29: #{attention.1} parent=15 // pred_check
          %p233 = pneg %p120
        $region30: #{attention.1} parent=15 // pred_check_branch
          %235 = sbr.rel (%p233) target = $region32
        $region31: #{attention.1} parent=15 // pred_region
          %s236 = sand.u32 %s110, 1
          %s237 = scalar_lea.sflag [#allocation9], %s236
          %s238 = sand.u32 %s110, 1
          %s239 = smul.addr %s238, 8
          %s240 = scalar_lea.vmem [#allocation8], %s239
          %s242 = ssub.s32 128, 128
          %243 = vsyncadd %s237, %s242
          %s244 = smul.addr %s22, 128
          %s245 = scalar_lea.hbm %s3, %s244
          %s247 = sshll.u32 %s240, 4
          %s248 = int_to_ptr.vmem [resolvable:$true] %s247
          %250 = dma.hbm_to_vmem [thread:$0]  %s245, 128, %s248, %s237
        $region32: #{attention.1} parent=15 // pred_fallthru
          _
      $region16: #{attention.1} parent=5 // pred_fallthru
        _
      %p251 = scmp.le.s32.totalorder 1, %s22
      %p252 = scmp.lt.s32.totalorder %s22, 3
      %p253 = pnand %p251, %p252
      %p254 = pneg %p253
      // Predicated region
      $region33: #{attention.1} parent=5 // pred_check
        _
      $region34: #{attention.1} parent=5 // pred_check_branch
        %256 = sbr.rel (%p253) target = $region36
      $region35: #{attention.1} parent=5 // pred_region
        %s257 = ssub.s32 %s22, 1
        %s258 = sand.u32 %s35, 1
        %s259 = scalar_lea.sflag [#allocation3], %s258
        %s260 = sand.u32 %s35, 1
        %s261 = smul.addr %s260, 8
        %s262 = scalar_lea.vmem [#allocation2], %s261
        // Predicated region
        $region37: #{attention.1} parent=35 // pred_check
          %p263 = pneg %p48
        $region38: #{attention.1} parent=35 // pred_check_branch
          %265 = sbr.rel (%p263) target = $region40
        $region39: #{attention.1} parent=35 // pred_region
          %266 = dma.done %s259, 128
        $region40: #{attention.1} parent=35 // pred_fallthru
          _
        %s267 = sand.u32 %s27, 1
        %s268 = scalar_lea.sflag [#allocation6], %s267
        %s269 = sand.u32 %s61, 1
        %s270 = smul.addr %s269, 128
        %s271 = scalar_lea.vmem [#allocation5], %s270
        // Predicated region
        $region41: #{attention.1} parent=35 // pred_check
          %p272 = pneg %p74
        $region42: #{attention.1} parent=35 // pred_check_branch
          %274 = sbr.rel (%p272) target = $region44
        $region43: #{attention.1} parent=35 // pred_region
          %275 = dma.done %s268, 2048
        $region44: #{attention.1} parent=35 // pred_fallthru
          _
        %s276 = sand.u32 %s27, 1
        %s277 = scalar_lea.sflag [#allocation6], %s276
        %s278 = sand.u32 %s87, 1
        %s279 = smul.addr %s278, 128
        %s280 = scalar_lea.vmem [#allocation7], %s279
        // Predicated region
        $region45: #{attention.1} parent=35 // pred_check
          %p281 = pneg %p100
        $region46: #{attention.1} parent=35 // pred_check_branch
          %283 = sbr.rel (%p281) target = $region48
        $region47: #{attention.1} parent=35 // pred_region
          %284 = dma.done %s277, 2048
        $region48: #{attention.1} parent=35 // pred_fallthru
          _
        %s285 = sand.u32 %s113, 1
        %s286 = scalar_lea.sflag [#allocation9], %s285
        %s287 = sand.u32 %s113, 1
        %s288 = smul.addr %s287, 8
        %s289 = scalar_lea.vmem [#allocation8], %s288
        // Predicated region
        $region49: #{attention.1} parent=35 // pred_check
          %p290 = pneg %p126
        $region50: #{attention.1} parent=35 // pred_check_branch
          %292 = sbr.rel (%p290) target = $region52
        $region51: #{attention.1} parent=35 // pred_region
          %293 = dma.done %s286, 128
        $region52: #{attention.1} parent=35 // pred_fallthru
          _
        %s294 = sand.u32 %s35, 1
        %s295 = scalar_lea.sflag [#allocation3], %s294
        %s296 = sand.u32 %s35, 1
        %s297 = smul.addr %s296, 8
        %s298 = scalar_lea.vmem [#allocation2], %s297
        %p299 = pneg %p48
        %p300 = pneg %p45
        %s301 = sand.u32 %s27, 1
        %s302 = scalar_lea.sflag [#allocation6], %s301
        %s303 = sand.u32 %s61, 1
        %s304 = smul.addr %s303, 128
        %s305 = scalar_lea.vmem [#allocation5], %s304
        %p306 = pneg %p74
        %p307 = pneg %p71
        %s308 = sand.u32 %s27, 1
        %s309 = scalar_lea.sflag [#allocation6], %s308
        %s310 = sand.u32 %s87, 1
        %s311 = smul.addr %s310, 128
        %s312 = scalar_lea.vmem [#allocation7], %s311
        %p313 = pneg %p100
        %p314 = pneg %p97
        %s315 = sand.u32 %s113, 1
        %s316 = scalar_lea.sflag [#allocation9], %s315
        %s317 = sand.u32 %s113, 1
        %s318 = smul.addr %s317, 8
        %s319 = scalar_lea.vmem [#allocation8], %s318
        %p320 = pneg %p126
        %p321 = pneg %p123
        %p322 = pneg %p152
        %p323 = pneg %p149
        %s324 = sand.u32 %s139, 1
        %s325 = scalar_lea.sflag [#allocation4], %s324
        %s326 = sand.u32 %s139, 1
        %s327 = smul.addr %s326, 8
        %s328 = scalar_lea.vmem [#allocation10], %s327
        %s329 = smul.u32 8, %s27
        %s330 = smul.u32 8, %s27
        %v331 = vld [vmem:[%s262] sm:$0xff]
        %v332 = vld [vmem:[%s271] sm:$0xff]
        %v333 = vld [vmem:[%s271 + $0x8] sm:$0xff]
        %v334 = vld [vmem:[%s271 + $0x10] sm:$0xff]
        %v335 = vld [vmem:[%s271 + $0x18] sm:$0xff]
        %v336 = vld [vmem:[%s271 + $0x20] sm:$0xff]
        %v337 = vld [vmem:[%s271 + $0x28] sm:$0xff]
        %v338 = vld [vmem:[%s271 + $0x30] sm:$0xff]
        %v339 = vld [vmem:[%s271 + $0x38] sm:$0xff]
        %v340 = vld [vmem:[%s271 + $0x40] sm:$0xff]
        %v341 = vld [vmem:[%s271 + $0x48] sm:$0xff]
        %v342 = vld [vmem:[%s271 + $0x50] sm:$0xff]
        %v343 = vld [vmem:[%s271 + $0x58] sm:$0xff]
        %v344 = vld [vmem:[%s271 + $0x60] sm:$0xff]
        %v345 = vld [vmem:[%s271 + $0x68] sm:$0xff]
        %v346 = vld [vmem:[%s271 + $0x70] sm:$0xff]
        %v347 = vld [vmem:[%s271 + $0x78] sm:$0xff]
        %v348 = vld [vmem:[%s280] sm:$0xff]
        %v349 = vld [vmem:[%s280 + $0x8] sm:$0xff]
        %v350 = vld [vmem:[%s280 + $0x10] sm:$0xff]
        %v351 = vld [vmem:[%s280 + $0x18] sm:$0xff]
        %v352 = vld [vmem:[%s280 + $0x20] sm:$0xff]
        %v353 = vld [vmem:[%s280 + $0x28] sm:$0xff]
        %v354 = vld [vmem:[%s280 + $0x30] sm:$0xff]
        %v355 = vld [vmem:[%s280 + $0x38] sm:$0xff]
        %v356 = vld [vmem:[%s280 + $0x40] sm:$0xff]
        %v357 = vld [vmem:[%s280 + $0x48] sm:$0xff]
        %v358 = vld [vmem:[%s280 + $0x50] sm:$0xff]
        %v359 = vld [vmem:[%s280 + $0x58] sm:$0xff]
        %v360 = vld [vmem:[%s280 + $0x60] sm:$0xff]
        %v361 = vld [vmem:[%s280 + $0x68] sm:$0xff]
        %v362 = vld [vmem:[%s280 + $0x70] sm:$0xff]
        %v363 = vld [vmem:[%s280 + $0x78] sm:$0xff]
        %v364 = vld [vmem:[%s289] sm:$0xff]
        %v366 = vcombine.high %v331, %v331
        %v368 = vunpack.c.l.s4 1966171168
        %v369 = vunpack.c.0.s8 %v368
        %v370 = vlaneseq
        %v371 = vshrl.u32 %v370, 7
        %v372 = vsub.s32 %v369, %v371
        %v373 = vrot.slane %v331, %v372
        %v375 = vunpack.c.l.s4 1966171168
        %v376 = vunpack.c.0.s8 %v375
        %v377 = vlaneseq
        %v378 = vshrl.u32 %v377, 7
        %v379 = vsub.s32 %v376, %v378
        %v380 = vrot.slane %v366, %v379
        %v381 = vcombine.high %v373, %v373
        %v382 = vcombine.high %v380, %v380
        %v384 = vunpack.c.l.s4 1966171168
        %v385 = vunpack.c.0.s8 %v384
        %v386 = vlaneseq
        %v387 = vshrl.u32 %v386, 7
        %v388 = vsub.s32 %v385, %v387
        %v389 = vrot.slane %v373, %v388
        %v391 = vunpack.c.l.s4 1966171168
        %v392 = vunpack.c.0.s8 %v391
        %v393 = vlaneseq
        %v394 = vshrl.u32 %v393, 7
        %v395 = vsub.s32 %v392, %v394
        %v396 = vrot.slane %v380, %v395
        %v398 = vunpack.c.l.s4 1966171168
        %v399 = vunpack.c.0.s8 %v398
        %v400 = vlaneseq
        %v401 = vshrl.u32 %v400, 7
        %v402 = vsub.s32 %v399, %v401
        %v403 = vrot.slane %v381, %v402
        %v405 = vunpack.c.l.s4 1966171168
        %v406 = vunpack.c.0.s8 %v405
        %v407 = vlaneseq
        %v408 = vshrl.u32 %v407, 7
        %v409 = vsub.s32 %v406, %v408
        %v410 = vrot.slane %v382, %v409
        %v411 = vcombine.high %v389, %v389
        %v412 = vcombine.high %v396, %v396
        %v413 = vcombine.high %v403, %v403
        %v414 = vcombine.high %v410, %v410
        %v415 = vlaneseq
        %v416 = vshrl.u32 %v415, 7
        %v417 = vsub.s32 0, %v416
        %v418 = vrot.slane %v389, %v417
        %v419 = vlaneseq
        %v420 = vshrl.u32 %v419, 7
        %v421 = vsub.s32 0, %v420
        %v422 = vrot.slane %v403, %v421
        %v423 = vlaneseq
        %v424 = vshrl.u32 %v423, 7
        %v425 = vsub.s32 0, %v424
        %v426 = vrot.slane %v411, %v425
        %v427 = vlaneseq
        %v428 = vshrl.u32 %v427, 7
        %v429 = vsub.s32 0, %v428
        %v430 = vrot.slane %v413, %v429
        %v431 = vlaneseq
        %v432 = vshrl.u32 %v431, 7
        %v433 = vsub.s32 0, %v432
        %v434 = vrot.slane %v396, %v433
        %v435 = vlaneseq
        %v436 = vshrl.u32 %v435, 7
        %v437 = vsub.s32 0, %v436
        %v438 = vrot.slane %v410, %v437
        %v439 = vlaneseq
        %v440 = vshrl.u32 %v439, 7
        %v441 = vsub.s32 0, %v440
        %v442 = vrot.slane %v412, %v441
        %v443 = vlaneseq
        %v444 = vshrl.u32 %v443, 7
        %v445 = vsub.s32 0, %v444
        %v446 = vrot.slane %v414, %v445
        %v455 = vmul.f32 %v418, %v332
        %v456 = vmul.f32 %v418, %v333
        %v457 = vmul.f32 %v422, %v334
        %v458 = vmul.f32 %v422, %v335
        %v459 = vmul.f32 %v426, %v336
        %v460 = vmul.f32 %v426, %v337
        %v461 = vmul.f32 %v430, %v338
        %v462 = vmul.f32 %v430, %v339
        %v463 = vmul.f32 %v434, %v340
        %v464 = vmul.f32 %v434, %v341
        %v465 = vmul.f32 %v438, %v342
        %v466 = vmul.f32 %v438, %v343
        %v467 = vmul.f32 %v442, %v344
        %v468 = vmul.f32 %v442, %v345
        %v469 = vmul.f32 %v446, %v346
        %v470 = vmul.f32 %v446, %v347
        %471 = vadd.xlane.f32.xlu0 %v455
        %v472 = vpop.xlane.xlu0 %471
        %473 = vadd.xlane.f32.xlu0 %v456
        %v474 = vpop.xlane.xlu0 %473
        %475 = vadd.xlane.f32.xlu0 %v457
        %v476 = vpop.xlane.xlu0 %475
        %477 = vadd.xlane.f32.xlu0 %v458
        %v478 = vpop.xlane.xlu0 %477
        %479 = vadd.xlane.f32.xlu0 %v459
        %v480 = vpop.xlane.xlu0 %479
        %481 = vadd.xlane.f32.xlu0 %v460
        %v482 = vpop.xlane.xlu0 %481
        %483 = vadd.xlane.f32.xlu0 %v461
        %v484 = vpop.xlane.xlu0 %483
        %485 = vadd.xlane.f32.xlu0 %v462
        %v486 = vpop.xlane.xlu0 %485
        %487 = vadd.xlane.f32.xlu0 %v463
        %v488 = vpop.xlane.xlu0 %487
        %489 = vadd.xlane.f32.xlu0 %v464
        %v490 = vpop.xlane.xlu0 %489
        %491 = vadd.xlane.f32.xlu0 %v465
        %v492 = vpop.xlane.xlu0 %491
        %493 = vadd.xlane.f32.xlu0 %v466
        %v494 = vpop.xlane.xlu0 %493
        %495 = vadd.xlane.f32.xlu0 %v467
        %v496 = vpop.xlane.xlu0 %495
        %497 = vadd.xlane.f32.xlu0 %v468
        %v498 = vpop.xlane.xlu0 %497
        %499 = vadd.xlane.f32.xlu0 %v469
        %v500 = vpop.xlane.xlu0 %499
        %501 = vadd.xlane.f32.xlu0 %v470
        %v502 = vpop.xlane.xlu0 %501
        %vm503 = vcmp.ne.f32.partialorder %v364, 0.0
        %vm504 = vcmp.eq.f32.partialorder %v472, 0.0
        %vm505 = vcmp.eq.f32.partialorder %v474, 0.0
        %vm506 = vcmp.eq.f32.partialorder %v476, 0.0
        %vm507 = vcmp.eq.f32.partialorder %v478, 0.0
        %vm508 = vcmp.eq.f32.partialorder %v480, 0.0
        %vm509 = vcmp.eq.f32.partialorder %v482, 0.0
        %vm510 = vcmp.eq.f32.partialorder %v484, 0.0
        %vm511 = vcmp.eq.f32.partialorder %v486, 0.0
        %vm512 = vcmp.eq.f32.partialorder %v488, 0.0
        %vm513 = vcmp.eq.f32.partialorder %v490, 0.0
        %vm514 = vcmp.eq.f32.partialorder %v492, 0.0
        %vm515 = vcmp.eq.f32.partialorder %v494, 0.0
        %vm516 = vcmp.eq.f32.partialorder %v496, 0.0
        %vm517 = vcmp.eq.f32.partialorder %v498, 0.0
        %vm518 = vcmp.eq.f32.partialorder %v500, 0.0
        %vm519 = vcmp.eq.f32.partialorder %v502, 0.0
        %v520 = vsel %vm504, 1, 0
        %v521 = vsel %vm505, 1, 0
        %v522 = vsel %vm506, 1, 0
        %v523 = vsel %vm507, 1, 0
        %v524 = vsel %vm508, 1, 0
        %v525 = vsel %vm509, 1, 0
        %v526 = vsel %vm510, 1, 0
        %v527 = vsel %vm511, 1, 0
        %v528 = vsel %vm512, 1, 0
        %v529 = vsel %vm513, 1, 0
        %v530 = vsel %vm514, 1, 0
        %v531 = vsel %vm515, 1, 0
        %v532 = vsel %vm516, 1, 0
        %v533 = vsel %vm517, 1, 0
        %v534 = vsel %vm518, 1, 0
        %v535 = vsel %vm519, 1, 0
        %v536 = vlaneseq
        %v537 = vand.u32 %v536, 127
        %v538 = vlaneseq
        %v539 = vshrl.u32 %v538, 7
        %v540 = vsub.s32 %v537, %v539
        %v541 = vrot.slane %v520, %v540
        %v542 = vadd.s32 %v537, 4294967288
        %v543 = vlaneseq
        %v544 = vshrl.u32 %v543, 7
        %v545 = vsub.s32 %v542, %v544
        %v546 = vrot.slane %v521, %v545
        %vm547 = vcmask 130112
        %v548 = vsel %vm547, %v546, %v541
        %v549 = vlaneseq
        %v550 = vshrl.u32 %v549, 7
        %v551 = vsub.s32 %v537, %v550
        %v552 = vrot.slane %v522, %v551
        %v553 = vlaneseq
        %v554 = vshrl.u32 %v553, 7
        %v555 = vsub.s32 %v542, %v554
        %v556 = vrot.slane %v523, %v555
        %v557 = vsel %vm547, %v556, %v552
        %v558 = vlaneseq
        %v559 = vshrl.u32 %v558, 7
        %v560 = vsub.s32 %v537, %v559
        %v561 = vrot.slane %v524, %v560
        %v562 = vlaneseq
        %v563 = vshrl.u32 %v562, 7
        %v564 = vsub.s32 %v542, %v563
        %v565 = vrot.slane %v525, %v564
        %v566 = vsel %vm547, %v565, %v561
        %v567 = vlaneseq
        %v568 = vshrl.u32 %v567, 7
        %v569 = vsub.s32 %v537, %v568
        %v570 = vrot.slane %v526, %v569
        %v571 = vlaneseq
        %v572 = vshrl.u32 %v571, 7
        %v573 = vsub.s32 %v542, %v572
        %v574 = vrot.slane %v527, %v573
        %v575 = vsel %vm547, %v574, %v570
        %v576 = vlaneseq
        %v577 = vshrl.u32 %v576, 7
        %v578 = vsub.s32 %v537, %v577
        %v579 = vrot.slane %v528, %v578
        %v580 = vlaneseq
        %v581 = vshrl.u32 %v580, 7
        %v582 = vsub.s32 %v542, %v581
        %v583 = vrot.slane %v529, %v582
        %v584 = vsel %vm547, %v583, %v579
        %v585 = vlaneseq
        %v586 = vshrl.u32 %v585, 7
        %v587 = vsub.s32 %v537, %v586
        %v588 = vrot.slane %v530, %v587
        %v589 = vlaneseq
        %v590 = vshrl.u32 %v589, 7
        %v591 = vsub.s32 %v542, %v590
        %v592 = vrot.slane %v531, %v591
        %v593 = vsel %vm547, %v592, %v588
        %v594 = vlaneseq
        %v595 = vshrl.u32 %v594, 7
        %v596 = vsub.s32 %v537, %v595
        %v597 = vrot.slane %v532, %v596
        %v598 = vlaneseq
        %v599 = vshrl.u32 %v598, 7
        %v600 = vsub.s32 %v542, %v599
        %v601 = vrot.slane %v533, %v600
        %v602 = vsel %vm547, %v601, %v597
        %v603 = vlaneseq
        %v604 = vshrl.u32 %v603, 7
        %v605 = vsub.s32 %v537, %v604
        %v606 = vrot.slane %v534, %v605
        %v607 = vlaneseq
        %v608 = vshrl.u32 %v607, 7
        %v609 = vsub.s32 %v542, %v608
        %v610 = vrot.slane %v535, %v609
        %v611 = vsel %vm547, %v610, %v606
        %vm612 = vcmask 1041409
        %v613 = vsel %vm612, %v557, %v548
        %vm614 = vcmask 1042434
        %v615 = vsel %vm614, %v566, %v613
        %vm616 = vcmask 1043459
        %v617 = vsel %vm616, %v575, %v615
        %vm618 = vcmask 1044484
        %v619 = vsel %vm618, %v584, %v617
        %vm620 = vcmask 1045509
        %v621 = vsel %vm620, %v593, %v619
        %vm622 = vcmask 1046534
        %v623 = vsel %vm622, %v602, %v621
        %vm624 = vcmask 1047559
        %v625 = vsel %vm624, %v611, %v623
        %vm626 = vcmp.ne.s32.totalorder %v625, 0
        %vm627 = vmor %vm503, %vm626
        %v644 = vlaneseq
        %v645 = vshrl.u32 %v644, 7
        %v646 = vsub.s32 %v537, %v645
        %v647 = vrot.slane %v472, %v646
        %v648 = vlaneseq
        %v649 = vshrl.u32 %v648, 7
        %v650 = vsub.s32 %v542, %v649
        %v651 = vrot.slane %v474, %v650
        %v652 = vsel %vm547, %v651, %v647
        %v653 = vlaneseq
        %v654 = vshrl.u32 %v653, 7
        %v655 = vsub.s32 %v537, %v654
        %v656 = vrot.slane %v476, %v655
        %v657 = vlaneseq
        %v658 = vshrl.u32 %v657, 7
        %v659 = vsub.s32 %v542, %v658
        %v660 = vrot.slane %v478, %v659
        %v661 = vsel %vm547, %v660, %v656
        %v662 = vlaneseq
        %v663 = vshrl.u32 %v662, 7
        %v664 = vsub.s32 %v537, %v663
        %v665 = vrot.slane %v480, %v664
        %v666 = vlaneseq
        %v667 = vshrl.u32 %v666, 7
        %v668 = vsub.s32 %v542, %v667
        %v669 = vrot.slane %v482, %v668
        %v670 = vsel %vm547, %v669, %v665
        %v671 = vlaneseq
        %v672 = vshrl.u32 %v671, 7
        %v673 = vsub.s32 %v537, %v672
        %v674 = vrot.slane %v484, %v673
        %v675 = vlaneseq
        %v676 = vshrl.u32 %v675, 7
        %v677 = vsub.s32 %v542, %v676
        %v678 = vrot.slane %v486, %v677
        %v679 = vsel %vm547, %v678, %v674
        %v680 = vlaneseq
        %v681 = vshrl.u32 %v680, 7
        %v682 = vsub.s32 %v537, %v681
        %v683 = vrot.slane %v488, %v682
        %v684 = vlaneseq
        %v685 = vshrl.u32 %v684, 7
        %v686 = vsub.s32 %v542, %v685
        %v687 = vrot.slane %v490, %v686
        %v688 = vsel %vm547, %v687, %v683
        %v689 = vlaneseq
        %v690 = vshrl.u32 %v689, 7
        %v691 = vsub.s32 %v537, %v690
        %v692 = vrot.slane %v492, %v691
        %v693 = vlaneseq
        %v694 = vshrl.u32 %v693, 7
        %v695 = vsub.s32 %v542, %v694
        %v696 = vrot.slane %v494, %v695
        %v697 = vsel %vm547, %v696, %v692
        %v698 = vlaneseq
        %v699 = vshrl.u32 %v698, 7
        %v700 = vsub.s32 %v537, %v699
        %v701 = vrot.slane %v496, %v700
        %v702 = vlaneseq
        %v703 = vshrl.u32 %v702, 7
        %v704 = vsub.s32 %v542, %v703
        %v705 = vrot.slane %v498, %v704
        %v706 = vsel %vm547, %v705, %v701
        %v707 = vlaneseq
        %v708 = vshrl.u32 %v707, 7
        %v709 = vsub.s32 %v537, %v708
        %v710 = vrot.slane %v500, %v709
        %v711 = vlaneseq
        %v712 = vshrl.u32 %v711, 7
        %v713 = vsub.s32 %v542, %v712
        %v714 = vrot.slane %v502, %v713
        %v715 = vsel %vm547, %v714, %v710
        %v716 = vsel %vm612, %v661, %v652
        %v717 = vsel %vm614, %v670, %v716
        %v718 = vsel %vm616, %v679, %v717
        %v719 = vsel %vm618, %v688, %v718
        %v720 = vsel %vm620, %v697, %v719
        %v721 = vsel %vm622, %v706, %v720
        %v722 = vsel %vm624, %v715, %v721
        %v724 = vsel %vm627, -3.4028235e+38, %v722
        %vm725 = vcmask 130048
        %v726 = vsel %vm725, %v724, -inf
        %727 = vmax.xlane.f32.xlu0 %v726
        %v728 = vpop.xlane.xlu0 %727
        %v730 = vlaneseq
        %v731 = vshrl.u32 %v730, 7
        %v732 = vsub.s32 0, %v731
        %v733 = vrot.slane %v728, %v732
        %v734 = vlaneseq
        %v735 = vshrl.u32 %v734, 7
        %v736 = vsub.s32 1, %v735
        %v737 = vrot.slane %v728, %v736
        %v738 = vlaneseq
        %v739 = vshrl.u32 %v738, 7
        %v740 = vsub.s32 2, %v739
        %v741 = vrot.slane %v728, %v740
        %v742 = vlaneseq
        %v743 = vshrl.u32 %v742, 7
        %v744 = vsub.s32 3, %v743
        %v745 = vrot.slane %v728, %v744
        %v746 = vlaneseq
        %v747 = vshrl.u32 %v746, 7
        %v748 = vsub.s32 4, %v747
        %v749 = vrot.slane %v728, %v748
        %v750 = vlaneseq
        %v751 = vshrl.u32 %v750, 7
        %v752 = vsub.s32 5, %v751
        %v753 = vrot.slane %v728, %v752
        %v754 = vlaneseq
        %v755 = vshrl.u32 %v754, 7
        %v756 = vsub.s32 6, %v755
        %v757 = vrot.slane %v728, %v756
        %v758 = vlaneseq
        %v759 = vshrl.u32 %v758, 7
        %v760 = vsub.s32 7, %v759
        %v761 = vrot.slane %v728, %v760
        %v770 = vsub.f32 %v472, %v733
        %v771 = vsub.f32 %v474, %v733
        %v772 = vsub.f32 %v476, %v737
        %v773 = vsub.f32 %v478, %v737
        %v774 = vsub.f32 %v480, %v741
        %v775 = vsub.f32 %v482, %v741
        %v776 = vsub.f32 %v484, %v745
        %v777 = vsub.f32 %v486, %v745
        %v778 = vsub.f32 %v488, %v749
        %v779 = vsub.f32 %v490, %v749
        %v780 = vsub.f32 %v492, %v753
        %v781 = vsub.f32 %v494, %v753
        %v782 = vsub.f32 %v496, %v757
        %v783 = vsub.f32 %v498, %v757
        %v784 = vsub.f32 %v500, %v761
        %v785 = vsub.f32 %v502, %v761
        %v786 = vmul.f32 %v770, 1.442695
        %v787 = vpow.pop %v786
        %v788 = vmul.f32 %v771, 1.442695
        %v789 = vpow.pop %v788
        %v790 = vmul.f32 %v772, 1.442695
        %v791 = vpow.pop %v790
        %v792 = vmul.f32 %v773, 1.442695
        %v793 = vpow.pop %v792
        %v794 = vmul.f32 %v774, 1.442695
        %v795 = vpow.pop %v794
        %v796 = vmul.f32 %v775, 1.442695
        %v797 = vpow.pop %v796
        %v798 = vmul.f32 %v776, 1.442695
        %v799 = vpow.pop %v798
        %v800 = vmul.f32 %v777, 1.442695
        %v801 = vpow.pop %v800
        %v802 = vmul.f32 %v778, 1.442695
        %v803 = vpow.pop %v802
        %v804 = vmul.f32 %v779, 1.442695
        %v805 = vpow.pop %v804
        %v806 = vmul.f32 %v780, 1.442695
        %v807 = vpow.pop %v806
        %v808 = vmul.f32 %v781, 1.442695
        %v809 = vpow.pop %v808
        %v810 = vmul.f32 %v782, 1.442695
        %v811 = vpow.pop %v810
        %v812 = vmul.f32 %v783, 1.442695
        %v813 = vpow.pop %v812
        %v814 = vmul.f32 %v784, 1.442695
        %v815 = vpow.pop %v814
        %v816 = vmul.f32 %v785, 1.442695
        %v817 = vpow.pop %v816
        %834 = vset.pattern.permute.xlu0 0
        %835 = vperm.xlu0 %834, %v787
        %v836 = vpop.permute.xlu0 %835
        %837 = vset.pattern.permute.xlu0 0
        %838 = vperm.xlu0 %837, %v789
        %v839 = vpop.permute.xlu0 %838
        %840 = vset.pattern.permute.xlu0 0
        %841 = vperm.xlu0 %840, %v791
        %v842 = vpop.permute.xlu0 %841
        %843 = vset.pattern.permute.xlu0 0
        %844 = vperm.xlu0 %843, %v793
        %v845 = vpop.permute.xlu0 %844
        %846 = vset.pattern.permute.xlu0 0
        %847 = vperm.xlu0 %846, %v795
        %v848 = vpop.permute.xlu0 %847
        %849 = vset.pattern.permute.xlu0 0
        %850 = vperm.xlu0 %849, %v797
        %v851 = vpop.permute.xlu0 %850
        %852 = vset.pattern.permute.xlu0 0
        %853 = vperm.xlu0 %852, %v799
        %v854 = vpop.permute.xlu0 %853
        %855 = vset.pattern.permute.xlu0 0
        %856 = vperm.xlu0 %855, %v801
        %v857 = vpop.permute.xlu0 %856
        %858 = vset.pattern.permute.xlu0 0
        %859 = vperm.xlu0 %858, %v803
        %v860 = vpop.permute.xlu0 %859
        %861 = vset.pattern.permute.xlu0 0
        %862 = vperm.xlu0 %861, %v805
        %v863 = vpop.permute.xlu0 %862
        %864 = vset.pattern.permute.xlu0 0
        %865 = vperm.xlu0 %864, %v807
        %v866 = vpop.permute.xlu0 %865
        %867 = vset.pattern.permute.xlu0 0
        %868 = vperm.xlu0 %867, %v809
        %v869 = vpop.permute.xlu0 %868
        %870 = vset.pattern.permute.xlu0 0
        %871 = vperm.xlu0 %870, %v811
        %v872 = vpop.permute.xlu0 %871
        %873 = vset.pattern.permute.xlu0 0
        %874 = vperm.xlu0 %873, %v813
        %v875 = vpop.permute.xlu0 %874
        %876 = vset.pattern.permute.xlu0 0
        %877 = vperm.xlu0 %876, %v815
        %v878 = vpop.permute.xlu0 %877
        %879 = vset.pattern.permute.xlu0 0
        %880 = vperm.xlu0 %879, %v817
        %v881 = vpop.permute.xlu0 %880
        %v882 = vlaneseq
        %v883 = vshrl.u32 %v882, 7
        %v884 = vsub.s32 %v537, %v883
        %v885 = vrot.slane %v836, %v884
        %v886 = vlaneseq
        %v887 = vshrl.u32 %v886, 7
        %v888 = vsub.s32 %v542, %v887
        %v889 = vrot.slane %v839, %v888
        %v890 = vsel %vm547, %v889, %v885
        %v891 = vlaneseq
        %v892 = vshrl.u32 %v891, 7
        %v893 = vsub.s32 %v537, %v892
        %v894 = vrot.slane %v842, %v893
        %v895 = vlaneseq
        %v896 = vshrl.u32 %v895, 7
        %v897 = vsub.s32 %v542, %v896
        %v898 = vrot.slane %v845, %v897
        %v899 = vsel %vm547, %v898, %v894
        %v900 = vlaneseq
        %v901 = vshrl.u32 %v900, 7
        %v902 = vsub.s32 %v537, %v901
        %v903 = vrot.slane %v848, %v902
        %v904 = vlaneseq
        %v905 = vshrl.u32 %v904, 7
        %v906 = vsub.s32 %v542, %v905
        %v907 = vrot.slane %v851, %v906
        %v908 = vsel %vm547, %v907, %v903
        %v909 = vlaneseq
        %v910 = vshrl.u32 %v909, 7
        %v911 = vsub.s32 %v537, %v910
        %v912 = vrot.slane %v854, %v911
        %v913 = vlaneseq
        %v914 = vshrl.u32 %v913, 7
        %v915 = vsub.s32 %v542, %v914
        %v916 = vrot.slane %v857, %v915
        %v917 = vsel %vm547, %v916, %v912
        %v918 = vlaneseq
        %v919 = vshrl.u32 %v918, 7
        %v920 = vsub.s32 %v537, %v919
        %v921 = vrot.slane %v860, %v920
        %v922 = vlaneseq
        %v923 = vshrl.u32 %v922, 7
        %v924 = vsub.s32 %v542, %v923
        %v925 = vrot.slane %v863, %v924
        %v926 = vsel %vm547, %v925, %v921
        %v927 = vlaneseq
        %v928 = vshrl.u32 %v927, 7
        %v929 = vsub.s32 %v537, %v928
        %v930 = vrot.slane %v866, %v929
        %v931 = vlaneseq
        %v932 = vshrl.u32 %v931, 7
        %v933 = vsub.s32 %v542, %v932
        %v934 = vrot.slane %v869, %v933
        %v935 = vsel %vm547, %v934, %v930
        %v936 = vlaneseq
        %v937 = vshrl.u32 %v936, 7
        %v938 = vsub.s32 %v537, %v937
        %v939 = vrot.slane %v872, %v938
        %v940 = vlaneseq
        %v941 = vshrl.u32 %v940, 7
        %v942 = vsub.s32 %v542, %v941
        %v943 = vrot.slane %v875, %v942
        %v944 = vsel %vm547, %v943, %v939
        %v945 = vlaneseq
        %v946 = vshrl.u32 %v945, 7
        %v947 = vsub.s32 %v537, %v946
        %v948 = vrot.slane %v878, %v947
        %v949 = vlaneseq
        %v950 = vshrl.u32 %v949, 7
        %v951 = vsub.s32 %v542, %v950
        %v952 = vrot.slane %v881, %v951
        %v953 = vsel %vm547, %v952, %v948
        %v954 = vsel %vm612, %v899, %v890
        %v955 = vsel %vm614, %v908, %v954
        %v956 = vsel %vm616, %v917, %v955
        %v957 = vsel %vm618, %v926, %v956
        %v958 = vsel %vm620, %v935, %v957
        %v959 = vsel %vm622, %v944, %v958
        %v960 = vsel %vm624, %v953, %v959
        %v962 = vsel %vm627, 0.0, %v960
        %v963 = vsel %vm725, %v962, 0.0
        %964 = vadd.xlane.f32.xlu0 %v963
        %v965 = vpop.xlane.xlu0 %964
        %vm966 = vcmp.eq.f32.partialorder %v965, 0.0
        %v967 = vsel %vm966, 1.0, %v965
        %v968 = vrcp.pop %v967
        %v969 = vmul.f32 %v962, %v968
        %v970 = vlaneseq
        %v971 = vshrl.u32 %v970, 7
        %v972 = vsub.s32 0, %v971
        %v973 = vrot.slane %v969, %v972
        %975 = vbcast.lane.b32.xlu0 %v973, 256
        %v976 = vpop.permute.xlu0 %975
        %s978 = sor.u32 256, 8
        %979 = vbcast.lane.b32.xlu0 %v973, %s978
        %v980 = vpop.permute.xlu0 %979
        %v981 = vlaneseq
        %v982 = vshrl.u32 %v981, 7
        %v983 = vsub.s32 1, %v982
        %v984 = vrot.slane %v969, %v983
        %986 = vbcast.lane.b32.xlu0 %v984, 256
        %v987 = vpop.permute.xlu0 %986
        %s989 = sor.u32 256, 8
        %990 = vbcast.lane.b32.xlu0 %v984, %s989
        %v991 = vpop.permute.xlu0 %990
        %v992 = vlaneseq
        %v993 = vshrl.u32 %v992, 7
        %v994 = vsub.s32 2, %v993
        %v995 = vrot.slane %v969, %v994
        %997 = vbcast.lane.b32.xlu0 %v995, 256
        %v998 = vpop.permute.xlu0 %997
        %s1000 = sor.u32 256, 8
        %1001 = vbcast.lane.b32.xlu0 %v995, %s1000
        %v1002 = vpop.permute.xlu0 %1001
        %v1003 = vlaneseq
        %v1004 = vshrl.u32 %v1003, 7
        %v1005 = vsub.s32 3, %v1004
        %v1006 = vrot.slane %v969, %v1005
        %1008 = vbcast.lane.b32.xlu0 %v1006, 256
        %v1009 = vpop.permute.xlu0 %1008
        %s1011 = sor.u32 256, 8
        %1012 = vbcast.lane.b32.xlu0 %v1006, %s1011
        %v1013 = vpop.permute.xlu0 %1012
        %v1014 = vlaneseq
        %v1015 = vshrl.u32 %v1014, 7
        %v1016 = vsub.s32 4, %v1015
        %v1017 = vrot.slane %v969, %v1016
        %1019 = vbcast.lane.b32.xlu0 %v1017, 256
        %v1020 = vpop.permute.xlu0 %1019
        %s1022 = sor.u32 256, 8
        %1023 = vbcast.lane.b32.xlu0 %v1017, %s1022
        %v1024 = vpop.permute.xlu0 %1023
        %v1025 = vlaneseq
        %v1026 = vshrl.u32 %v1025, 7
        %v1027 = vsub.s32 5, %v1026
        %v1028 = vrot.slane %v969, %v1027
        %1030 = vbcast.lane.b32.xlu0 %v1028, 256
        %v1031 = vpop.permute.xlu0 %1030
        %s1033 = sor.u32 256, 8
        %1034 = vbcast.lane.b32.xlu0 %v1028, %s1033
        %v1035 = vpop.permute.xlu0 %1034
        %v1036 = vlaneseq
        %v1037 = vshrl.u32 %v1036, 7
        %v1038 = vsub.s32 6, %v1037
        %v1039 = vrot.slane %v969, %v1038
        %1041 = vbcast.lane.b32.xlu0 %v1039, 256
        %v1042 = vpop.permute.xlu0 %1041
        %s1044 = sor.u32 256, 8
        %1045 = vbcast.lane.b32.xlu0 %v1039, %s1044
        %v1046 = vpop.permute.xlu0 %1045
        %v1047 = vlaneseq
        %v1048 = vshrl.u32 %v1047, 7
        %v1049 = vsub.s32 7, %v1048
        %v1050 = vrot.slane %v969, %v1049
        %1052 = vbcast.lane.b32.xlu0 %v1050, 256
        %v1053 = vpop.permute.xlu0 %1052
        %s1055 = sor.u32 256, 8
        %1056 = vbcast.lane.b32.xlu0 %v1050, %s1055
        %v1057 = vpop.permute.xlu0 %1056
        %v1058 = vmul.f32 %v976, %v348
        %v1059 = vmul.f32 %v980, %v349
        %v1060 = vmul.f32 %v987, %v350
        %v1061 = vmul.f32 %v991, %v351
        %v1062 = vmul.f32 %v998, %v352
        %v1063 = vmul.f32 %v1002, %v353
        %v1064 = vmul.f32 %v1009, %v354
        %v1065 = vmul.f32 %v1013, %v355
        %v1066 = vmul.f32 %v1020, %v356
        %v1067 = vmul.f32 %v1024, %v357
        %v1068 = vmul.f32 %v1031, %v358
        %v1069 = vmul.f32 %v1035, %v359
        %v1070 = vmul.f32 %v1042, %v360
        %v1071 = vmul.f32 %v1046, %v361
        %v1072 = vmul.f32 %v1053, %v362
        %v1073 = vmul.f32 %v1057, %v363
        %v1074 = vadd.f32 %v1058, %v1059
        %v1075 = vrot.slane %v1074, 4
        %v1076 = vadd.f32 %v1074, %v1075
        %v1077 = vrot.slane %v1076, 2
        %v1078 = vadd.f32 %v1076, %v1077
        %v1079 = vrot.slane %v1078, 1
        %v1080 = vadd.f32 %v1078, %v1079
        %v1081 = vadd.f32 %v1060, %v1061
        %v1082 = vrot.slane %v1081, 4
        %v1083 = vadd.f32 %v1081, %v1082
        %v1084 = vrot.slane %v1083, 2
        %v1085 = vadd.f32 %v1083, %v1084
        %v1086 = vrot.slane %v1085, 1
        %v1087 = vadd.f32 %v1085, %v1086
        %v1088 = vadd.f32 %v1062, %v1063
        %v1089 = vrot.slane %v1088, 4
        %v1090 = vadd.f32 %v1088, %v1089
        %v1091 = vrot.slane %v1090, 2
        %v1092 = vadd.f32 %v1090, %v1091
        %v1093 = vrot.slane %v1092, 1
        %v1094 = vadd.f32 %v1092, %v1093
        %v1095 = vadd.f32 %v1064, %v1065
        %v1096 = vrot.slane %v1095, 4
        %v1097 = vadd.f32 %v1095, %v1096
        %v1098 = vrot.slane %v1097, 2
        %v1099 = vadd.f32 %v1097, %v1098
        %v1100 = vrot.slane %v1099, 1
        %v1101 = vadd.f32 %v1099, %v1100
        %v1102 = vadd.f32 %v1066, %v1067
        %v1103 = vrot.slane %v1102, 4
        %v1104 = vadd.f32 %v1102, %v1103
        %v1105 = vrot.slane %v1104, 2
        %v1106 = vadd.f32 %v1104, %v1105
        %v1107 = vrot.slane %v1106, 1
        %v1108 = vadd.f32 %v1106, %v1107
        %v1109 = vadd.f32 %v1068, %v1069
        %v1110 = vrot.slane %v1109, 4
        %v1111 = vadd.f32 %v1109, %v1110
        %v1112 = vrot.slane %v1111, 2
        %v1113 = vadd.f32 %v1111, %v1112
        %v1114 = vrot.slane %v1113, 1
        %v1115 = vadd.f32 %v1113, %v1114
        %v1116 = vadd.f32 %v1070, %v1071
        %v1117 = vrot.slane %v1116, 4
        %v1118 = vadd.f32 %v1116, %v1117
        %v1119 = vrot.slane %v1118, 2
        %v1120 = vadd.f32 %v1118, %v1119
        %v1121 = vrot.slane %v1120, 1
        %v1122 = vadd.f32 %v1120, %v1121
        %v1123 = vadd.f32 %v1072, %v1073
        %v1124 = vrot.slane %v1123, 4
        %v1125 = vadd.f32 %v1123, %v1124
        %v1126 = vrot.slane %v1125, 2
        %v1127 = vadd.f32 %v1125, %v1126
        %v1128 = vrot.slane %v1127, 1
        %v1129 = vadd.f32 %v1127, %v1128
        %v1138 = vsel %vm612, %v1087, %v1080
        %v1139 = vsel %vm614, %v1094, %v1138
        %v1140 = vsel %vm616, %v1101, %v1139
        %v1141 = vsel %vm618, %v1108, %v1140
        %v1142 = vsel %vm620, %v1115, %v1141
        %v1143 = vsel %vm622, %v1122, %v1142
        %v1144 = vsel %vm624, %v1129, %v1143
        %1146 = vst [vmem:[%s328] sm:$0xff] %v1144
        %s1147 = sand.u32 %s139, 1
        %s1148 = scalar_lea.sflag [#allocation4], %s1147
        %s1149 = sand.u32 %s139, 1
        %s1150 = smul.addr %s1149, 8
        %s1151 = scalar_lea.vmem [#allocation10], %s1150
        // Predicated region
        $region53: #{attention.1} parent=35 // pred_check
          %p1152 = pneg %p149
        $region54: #{attention.1} parent=35 // pred_check_branch
          %1154 = sbr.rel (%p1152) target = $region56
        $region55: #{attention.1} parent=35 // pred_region
          %s1156 = ssub.s32 128, 128
          %1157 = vsyncadd %s1148, %s1156
          %s1158 = smul.addr %s27, 128
          %s1159 = scalar_lea.hbm %s4, %s1158
          %s1161 = sshll.u32 %s1151, 4
          %s1162 = int_to_ptr.vmem [resolvable:$true] %s1161
          %1164 = dma.vmem_to_hbm [thread:$0]  %s1162, 128, %s1159, %s1148
        $region56: #{attention.1} parent=35 // pred_fallthru
          _
      $region36: #{attention.1} parent=5 // pred_fallthru
        _
      %p1165 = scmp.le.s32.totalorder 2, %s22
      // Predicated region
      $region57: #{attention.1} parent=5 // pred_check
        %p1166 = pneg %p1165
      $region58: #{attention.1} parent=5 // pred_check_branch
        %1168 = sbr.rel (%p1166) target = $region60
      $region59: #{attention.1} parent=5 // pred_region
        %s1169 = ssub.s32 %s22, 2
        // Predicated region
        $region61: #{attention.1} parent=59 // pred_check
          %p1170 = pneg %p155
        $region62: #{attention.1} parent=59 // pred_check_branch
          %1172 = sbr.rel (%p1170) target = $region64
        $region63: #{attention.1} parent=59 // pred_region
          %s1173 = sand.u32 %s140, 1
          %s1174 = scalar_lea.sflag [#allocation4], %s1173
          %s1175 = sand.u32 %s140, 1
          %s1176 = smul.addr %s1175, 8
          %s1177 = scalar_lea.vmem [#allocation10], %s1176
          %1178 = dma.done %s1174, 128
        $region64: #{attention.1} parent=59 // pred_fallthru
          _
      $region60: #{attention.1} parent=5 // pred_fallthru
        _
    $region6: #{attention.1} parent=1 // loop_footer
      %s26 = sadd.s32 1, %s22
    $region7: #{attention.1} parent=1 // loop_footer_branch
      %21 = sbr.rel target = $region3
    $region8: #{attention.1} parent=1 // loop_exit
      _
    %1179 = vsyncpa [#allocation3], 1
    %s1180 = scalar_lea.sflag [#allocation3], 1
    %1181 = vsyncpa %s1180, 1
    %1182 = vsyncpa [#allocation6], 1
    %s1183 = scalar_lea.sflag [#allocation6], 1
    %1184 = vsyncpa %s1183, 1
    %1185 = vsyncpa [#allocation9], 1
    %s1186 = scalar_lea.sflag [#allocation9], 1
    %1187 = vsyncpa %s1186, 1
    %1188 = vsyncpa [#allocation4], 1
    %s1189 = scalar_lea.sflag [#allocation4], 1
    %1190 = vsyncpa %s1189, 1

</llo_original>
